<compile_context>
chip_gen: v7x
topology: tpu7x:2x2x1
jax: 0.10.0
libtpu: 0.0.40
codegen_flags: <defaults>
</compile_context>

<pallas_src>
import functools

import numpy as np

import jax
import jax.numpy as jnp
from jax.experimental import pallas as pl
from jax.experimental.pallas import tpu as pltpu


LATENT_SIZE = 16
LAYER_SIZES = (8, 4, 3)            # "cnn-8-4-3"
IMG_SIZE = (16, 16)
Z_DIM = IMG_SIZE[0] // 2 ** (len(LAYER_SIZES) - 1)   # = 4
KSIZE = 4                          # ConvTranspose2d kernel (stride 2, pad 1)
BN_EPS = 1e-5

# For stride-2 / k=4 / pad=1 transposed conv, output parity q only receives
# contributions from input offset d with kernel index k:  out[2i+q] += x[i+d]*w[k]
_KY_OF = ({0: 1, -1: 3},           # q = 0
          {0: 2, 1: 0})            # q = 1


# --------------------------- host-side packing ------------------------------

def _pack_w9_np(w):
    """PyTorch ConvTranspose2d weight (Cin, Cout, 4, 4) -> (4*Cout, 9*Cin):
    rows = output-parity-major Cout blocks, cols = 9-tap-major Cin blocks,
    with zeros at the taps a given parity does not use."""
    w = np.asarray(w, np.float32)
    cin, cout = w.shape[0], w.shape[1]
    out = np.zeros((4 * cout, 9 * cin), np.float32)
    for py in range(2):
        for px in range(2):
            p = py * 2 + px
            for dy in (-1, 0, 1):
                for dx in (-1, 0, 1):
                    if dy in _KY_OF[py] and dx in _KY_OF[px]:
                        ky, kx = _KY_OF[py][dy], _KY_OF[px][dx]
                        j = (dy + 1) * 3 + (dx + 1)
                        out[p * cout:(p + 1) * cout,
                            j * cin:(j + 1) * cin] = w[:, :, ky, kx].T
    return out


def _shift_masks_np(batch, h, w):
    """(9, B*h*w) f32 validity masks for offsets dy,dx in {-1,0,1}
    (lane t = b*h*w + y*w + x)."""
    t = np.arange(batch * h * w)
    yy = (t // w) % h
    xx = t % w
    rows = []
    for dy in (-1, 0, 1):
        for dx in (-1, 0, 1):
            ok = (yy + dy >= 0) & (yy + dy < h) & (xx + dx >= 0) & (xx + dx < w)
            rows.append(ok.astype(np.float32))
    return np.stack(rows, axis=0)


def _slab_layout(batch):
    """Row layout of the single packed parameter slab (pieces 8-row aligned)."""
    c0, c1, c2 = LAYER_SIZES
    s0 = Z_DIM * Z_DIM
    shapes = (
        ("lin_w", (LATENT_SIZE, c0 * s0)),
        ("lin_b", (1, c0 * s0)),
        ("w9_0", (4 * c1, 9 * c0)),
        ("w9_1", (4 * c2, 9 * c1)),
        ("mask", (9, batch * s0)),
        ("gamma", (c1, 1)),
        ("beta", (c1, 1)),
        ("b1t", (4 * c2, 1)),
    )
    offs, row, width = {}, 0, 0
    for name, (nr, nc) in shapes:
        row = ((row + 7) // 8) * 8
        offs[name] = (row, nr, nc)
        row += nr
        width = max(width, nc)
    total_rows = ((row + 7) // 8) * 8
    width = ((width + 127) // 128) * 128
    return offs, total_rows, width


def prepare_decoder(params, batch):
    """One-time packing of all parameters + constant masks into one f32 slab."""
    c0, c1, c2 = LAYER_SIZES
    offs, total_rows, width = _slab_layout(batch)
    pieces = {
        "lin_w": np.asarray(params["lin_w"], np.float32),
        "lin_b": np.asarray(params["lin_b"], np.float32).reshape(1, -1),
        "w9_0": _pack_w9_np(params["ct0_w"]),
        "w9_1": _pack_w9_np(params["ct1_w"]),
        "mask": _shift_masks_np(batch, Z_DIM, Z_DIM),
        "gamma": np.asarray(params["bn1_gamma"], np.float32).reshape(c1, 1),
        "beta": np.asarray(params["bn1_beta"], np.float32).reshape(c1, 1),
        "b1t": np.tile(np.asarray(params["ct1_b"], np.float32).reshape(1, c2),
                       (4, 1)).reshape(4 * c2, 1),
    }
    # params["ct0_b"] is intentionally not packed: a per-channel bias feeding a
    # training-mode BatchNorm has no effect on the forward output.
    slab = np.zeros((total_rows, width), np.float32)
    for name, arr in pieces.items():
        r0, nr, nc = offs[name]
        assert arr.shape == (nr, nc), (name, arr.shape, (nr, nc))
        slab[r0:r0 + nr, :nc] = arr
    return {"batch": batch, "slab": jnp.asarray(slab)}


# ------------------------------ fused kernel --------------------------------

def _decoder_kernel(z_ref, slab_ref, out_ref, *, batch, offs):
    c0, c1, c2 = LAYER_SIZES
    s0 = Z_DIM * Z_DIM              # 16 positions on the 4x4 z-grid
    m0 = batch * s0                 # lane width of the 4x4-grid layout
    f32 = jnp.float32

    slab = slab_ref[...]

    def piece(name):
        r0, nr, nc = offs[name]
        return slab[r0:r0 + nr, 0:nc]

    masks = piece("mask")           # (9, m0): in-image validity per (dy,dx)

    def shift_mask(x, dm, dn):
        """x at spatial offset (dm,dn) on the 4x4 grid, zero outside the image.
        Wrap-around lane rotation (two static slices) + mask; wrapped /
        cross-batch lanes are exactly the masked-out ones."""
        if dm == 0 and dn == 0:
            return x
        k = (dm * Z_DIM + dn) % m0
        xs = jnp.concatenate([x[:, k:], x[:, :k]], axis=1)
        j = (dm + 1) * 3 + (dn + 1)
        return xs * masks[j:j + 1, :]

    # ---- z_develop: Linear(latent -> c0*4*4) --------------------------------
    zh = jnp.dot(z_ref[...], piece("lin_w"), preferred_element_type=f32)
    zh = zh + piece("lin_b")                               # (B, c0*16)
    # Repack (B, c0*16) -> (c0, B*16)  (lane t = b*16 + y*4 + x).
    # Kept as B*c0 static lane slices: the alternative (an in-kernel
    # (c0*16, B) -> (c0, 16*B) reshape) relies on a generic Mosaic relayout;
    # at B=2 this is a handful of vreg selects.
    per_b = []
    for b in range(batch):
        rows = [zh[b:b + 1, c * s0:(c + 1) * s0] for c in range(c0)]
        per_b.append(jnp.concatenate(rows, axis=0))        # (c0, 16)
    x0 = jnp.concatenate(per_b, axis=1)                    # (c0, m0)

    # ---- ConvTranspose2d(c0 -> c1): one 9-tap GEMM for all 4 parities -------
    x9 = jnp.concatenate(
        [shift_mask(x0, dm, dn) for dm in (-1, 0, 1) for dn in (-1, 0, 1)],
        axis=0)                                            # (9*c0, m0)
    y0 = jnp.dot(piece("w9_0"), x9, preferred_element_type=f32)   # (4*c1, m0)
    # Rows: (py*2+px)*c1 + co  ==  conv0 output at pixel (2m+py, 2n+px).
    # ConvT0 bias omitted: a per-channel constant is cancelled exactly by the
    # training-mode BatchNorm that follows.

    # ---- BatchNorm2d(c1) (batch stats, biased var) + ReLU, single pass ------
    n_el = float(4 * m0)                                   # B*8*8 per channel
    s1 = jnp.sum(y0, axis=1, keepdims=True)                # (4*c1, 1)
    s2 = jnp.sum(y0 * y0, axis=1, keepdims=True)
    cs1 = s1[0:c1] + s1[c1:2 * c1] + s1[2 * c1:3 * c1] + s1[3 * c1:4 * c1]
    cs2 = s2[0:c1] + s2[c1:2 * c1] + s2[2 * c1:3 * c1] + s2[3 * c1:4 * c1]
    mean = cs1 / n_el
    var = cs2 / n_el - mean * mean
    bn_scale = piece("gamma") * jax.lax.rsqrt(var + BN_EPS)       # (c1, 1)
    bn_shift = piece("beta") - mean * bn_scale
    bn_scale4 = jnp.concatenate([bn_scale] * 4, axis=0)           # (4*c1, 1)
    bn_shift4 = jnp.concatenate([bn_shift] * 4, axis=0)
    u = jnp.maximum(y0 * bn_scale4 + bn_shift4, 0.0)              # (4*c1, m0)
    # TODO(synk): BatchNorm running_mean/running_var buffer updates (training
    # side effect) are not materialized; they do not affect the forward output.

    # ---- ConvTranspose2d(c1 -> c2): parity arithmetic over the phase blocks -
    # u stays phase-separated (no scatter table): tap (dy,dx) of the 8x8
    # activation at phase (py,px) is phase ((py+dy)%2, (px+dx)%2) shifted by
    # ((py+dy)//2, (px+dx)//2) on the same 4x4 grid.
    u_blk = [u[p * c1:(p + 1) * c1, :] for p in range(4)]
    cache = {}

    def u_tap(p_src, dm, dn):
        key = (p_src, dm, dn)
        if key not in cache:
            cache[key] = shift_mask(u_blk[p_src], dm, dn)
        return cache[key]

    cols = []
    for py in range(2):
        for px in range(2):
            taps = []
            for dy in (-1, 0, 1):
                sy = py + dy
                for dx in (-1, 0, 1):
                    sx = px + dx
                    taps.append(u_tap((sy % 2) * 2 + (sx % 2), sy // 2, sx // 2))
            cols.append(jnp.concatenate(taps, axis=0))     # (9*c1, m0)
    x1 = jnp.concatenate(cols, axis=1)                     # (9*c1, 4*m0)

    y1 = jnp.dot(piece("w9_1"), x1, preferred_element_type=f32)   # (4*c2, 4*m0)
    # Rows: (qy*2+qx)*c2 + c; lanes: (py*2+px)*m0 + b*16 + m*4 + n
    #   ->  output pixel (b, c, 4m+2py+qy, 4n+2px+qx).
    out_ref[...] = jax.nn.sigmoid(y1 + piece("b1t"))


# ------------------------------ forward pass --------------------------------

@functools.partial(jax.jit, static_argnames=("batch",))
def _decoder_call(z, slab, *, batch):
    c2 = LAYER_SIZES[-1]
    m0 = batch * Z_DIM * Z_DIM
    offs, _, _ = _slab_layout(batch)
    vmem = pl.BlockSpec(memory_space=pltpu.MemorySpace.VMEM)

    out = pl.pallas_call(
        functools.partial(_decoder_kernel, batch=batch, offs=offs),
        out_shape=jax.ShapeDtypeStruct((4 * c2, 4 * m0), jnp.float32),
        in_specs=[vmem, vmem],
        out_specs=vmem,
    )(z, slab)

    # Tiny epilogue: un-interleave the 16 (input-phase x output-parity) blocks
    # into NCHW.  One fused XLA transpose over ~6 KiB; an in-kernel lane
    # scatter (table GEMM / strided stores) costs more than this dispatch.
    y = out.reshape(2, 2, c2, 2, 2, batch, Z_DIM, Z_DIM)   # (qy,qx,c,py,px,b,m,n)
    img = jnp.transpose(y, (5, 2, 6, 3, 0, 7, 4, 1))       # (b,c,m,py,qy,n,px,qx)
    return img.reshape(batch, c2, 4 * Z_DIM, 4 * Z_DIM)


def decoder_forward(prep, z):
    """z: (B, latent) -> img: (B, 3, 16, 16), matching Decoder.forward."""
    batch = z.shape[0]
    assert batch == prep["batch"]
    return _decoder_call(z.astype(jnp.float32), prep["slab"], batch=batch)


# ---------------------------- init + reference ------------------------------

def init_params(key):
    c0, c1, c2 = LAYER_SIZES
    keys = jax.random.split(key, 6)

    def unif(rng, shape, fan_in):
        bound = 1.0 / jnp.sqrt(jnp.float32(fan_in))
        return jax.random.uniform(rng, shape, jnp.float32, -bound, bound)

    return {
        # z_develop: Linear(latent -> c0 * Z_DIM**2)
        "lin_w": unif(keys[0], (LATENT_SIZE, c0 * Z_DIM * Z_DIM), LATENT_SIZE),
        "lin_b": unif(keys[1], (c0 * Z_DIM * Z_DIM,), LATENT_SIZE),
        # ConvTranspose2d(c0 -> c1); PyTorch weight layout (Cin, Cout, k, k)
        "ct0_w": unif(keys[2], (c0, c1, KSIZE, KSIZE), c1 * KSIZE * KSIZE),
        "ct0_b": unif(keys[3], (c1,), c1 * KSIZE * KSIZE),
        # BatchNorm2d(c1) default init
        "bn1_gamma": jnp.ones((c1,), jnp.float32),
        "bn1_beta": jnp.zeros((c1,), jnp.float32),
        # ConvTranspose2d(c1 -> c2)
        "ct1_w": unif(keys[4], (c1, c2, KSIZE, KSIZE), c2 * KSIZE * KSIZE),
        "ct1_b": unif(keys[5], (c2,), c2 * KSIZE * KSIZE),
    }


def _reference_forward(params, z):
    """Pure-JAX reference with PyTorch Decoder.forward semantics."""
    batch = z.shape[0]
    c0 = LAYER_SIZES[0]
    hp = jax.lax.Precision.HIGHEST
    h = jnp.dot(z, params["lin_w"], precision=hp) + params["lin_b"]
    x = h.reshape(batch, c0, Z_DIM, Z_DIM)

    def convt(x, w, b):
        k = w.shape[2]
        wf = jnp.flip(w, (2, 3)).transpose(1, 0, 2, 3)       # (Cout, Cin, k, k)
        y = jax.lax.conv_general_dilated(
            x, wf, window_strides=(1, 1), padding=[(k - 2, k - 2)] * 2,
            lhs_dilation=(2, 2), dimension_numbers=("NCHW", "OIHW", "NCHW"),
            precision=hp)
        return y + b.reshape(1, -1, 1, 1)

    x = convt(x, params["ct0_w"], params["ct0_b"])
    mean = x.mean(axis=(0, 2, 3), keepdims=True)
    var = jnp.mean(jnp.square(x - mean), axis=(0, 2, 3), keepdims=True)
    x = (x - mean) * jax.lax.rsqrt(var + BN_EPS)
    x = x * params["bn1_gamma"].reshape(1, -1, 1, 1) + params["bn1_beta"].reshape(1, -1, 1, 1)
    x = jnp.maximum(x, 0.0)
    x = convt(x, params["ct1_w"], params["ct1_b"])
    return jax.nn.sigmoid(x)


if __name__ == "__main__":
    key = jax.random.PRNGKey(0)
    kz, kp = jax.random.split(key)

    params = init_params(kp)
    B = 2
    z = jax.random.normal(kz, (B, LATENT_SIZE), jnp.float32)

    prep = prepare_decoder(params, B)
    out = decoder_forward(prep, z)
    out = jax.block_until_ready(out)

    assert out.shape == (B, LAYER_SIZES[-1], IMG_SIZE[0], IMG_SIZE[1]), out.shape
    assert bool(jnp.all(jnp.isfinite(out)))
    assert bool(jnp.all((out >= 0.0) & (out <= 1.0)))   # sigmoid output range

    ref = _reference_forward(params, z)
    max_err = float(jnp.max(jnp.abs(out - ref)))
    assert max_err < 2e-2, f"mismatch vs pure-JAX reference: {max_err}"

    print("KERNEL_OK")
</pallas_src>

<mosaic_0001>
module attributes {stable_mosaic.version = 11 : i64} {
  func.func @_decoder_kernel(%arg0: memref<2x16xf32, #tpu.memory_space<vmem>>, %arg1: memref<104x128xf32, #tpu.memory_space<vmem>>, %arg2: memref<12x128xf32, #tpu.memory_space<vmem>>) attributes {dimension_semantics = [], scalar_prefetch = 0 : i64, scratch_operands = 0 : i64, tpu.core_type = #tpu.core_type<tc>} {
    %c0 = arith.constant 0 : index
    %c0_0 = arith.constant 0 : index
    %0 = vector.load %arg1[%c0, %c0_0] : memref<104x128xf32, #tpu.memory_space<vmem>>, vector<104x128xf32>
    %1 = vector.extract_strided_slice %0 {offsets = [56, 0], sizes = [9, 32], strides = [1, 1]} : vector<104x128xf32> to vector<9x32xf32>
    %c0_1 = arith.constant 0 : index
    %c0_2 = arith.constant 0 : index
    %2 = vector.load %arg0[%c0_1, %c0_2] : memref<2x16xf32, #tpu.memory_space<vmem>>, vector<2x16xf32>
    %3 = vector.extract_strided_slice %0 {offsets = [0, 0], sizes = [16, 128], strides = [1, 1]} : vector<104x128xf32> to vector<16x128xf32>
    %cst = arith.constant dense<0.000000e+00> : vector<2x128xf32>
    %4 = tpu.matmul %2, %3, %cst {dimension_numbers = #tpu.dot_dimension_numbers<[1], [0], [0], [1], [0, 0, 1, 1], [], []>} : vector<2x16xf32>, vector<16x128xf32>, vector<2x128xf32> -> vector<2x128xf32>
    %5 = vector.extract_strided_slice %0 {offsets = [16, 0], sizes = [1, 128], strides = [1, 1]} : vector<104x128xf32> to vector<1x128xf32>
    %6 = vector.broadcast %5 : vector<1x128xf32> to vector<2x128xf32>
    %7 = arith.addf %4, %6 : vector<2x128xf32>
    %8 = vector.extract_strided_slice %7 {offsets = [0, 0], sizes = [1, 16], strides = [1, 1]} : vector<2x128xf32> to vector<1x16xf32>
    %9 = vector.extract_strided_slice %7 {offsets = [0, 16], sizes = [1, 16], strides = [1, 1]} : vector<2x128xf32> to vector<1x16xf32>
    %10 = vector.extract_strided_slice %7 {offsets = [0, 32], sizes = [1, 16], strides = [1, 1]} : vector<2x128xf32> to vector<1x16xf32>
    %11 = vector.extract_strided_slice %7 {offsets = [0, 48], sizes = [1, 16], strides = [1, 1]} : vector<2x128xf32> to vector<1x16xf32>
    %12 = vector.extract_strided_slice %7 {offsets = [0, 64], sizes = [1, 16], strides = [1, 1]} : vector<2x128xf32> to vector<1x16xf32>
    %13 = vector.extract_strided_slice %7 {offsets = [0, 80], sizes = [1, 16], strides = [1, 1]} : vector<2x128xf32> to vector<1x16xf32>
    %14 = vector.extract_strided_slice %7 {offsets = [0, 96], sizes = [1, 16], strides = [1, 1]} : vector<2x128xf32> to vector<1x16xf32>
    %15 = vector.extract_strided_slice %7 {offsets = [0, 112], sizes = [1, 16], strides = [1, 1]} : vector<2x128xf32> to vector<1x16xf32>
    %16 = tpu.concatenate %8, %9, %10, %11, %12, %13, %14, %15 in 0 : vector<1x16xf32>, vector<1x16xf32>, vector<1x16xf32>, vector<1x16xf32>, vector<1x16xf32>, vector<1x16xf32>, vector<1x16xf32>, vector<1x16xf32> -> vector<8x16xf32>
    %17 = vector.extract_strided_slice %7 {offsets = [1, 0], sizes = [1, 16], strides = [1, 1]} : vector<2x128xf32> to vector<1x16xf32>
    %18 = vector.extract_strided_slice %7 {offsets = [1, 16], sizes = [1, 16], strides = [1, 1]} : vector<2x128xf32> to vector<1x16xf32>
    %19 = vector.extract_strided_slice %7 {offsets = [1, 32], sizes = [1, 16], strides = [1, 1]} : vector<2x128xf32> to vector<1x16xf32>
    %20 = vector.extract_strided_slice %7 {offsets = [1, 48], sizes = [1, 16], strides = [1, 1]} : vector<2x128xf32> to vector<1x16xf32>
    %21 = vector.extract_strided_slice %7 {offsets = [1, 64], sizes = [1, 16], strides = [1, 1]} : vector<2x128xf32> to vector<1x16xf32>
    %22 = vector.extract_strided_slice %7 {offsets = [1, 80], sizes = [1, 16], strides = [1, 1]} : vector<2x128xf32> to vector<1x16xf32>
    %23 = vector.extract_strided_slice %7 {offsets = [1, 96], sizes = [1, 16], strides = [1, 1]} : vector<2x128xf32> to vector<1x16xf32>
    %24 = vector.extract_strided_slice %7 {offsets = [1, 112], sizes = [1, 16], strides = [1, 1]} : vector<2x128xf32> to vector<1x16xf32>
    %25 = tpu.concatenate %17, %18, %19, %20, %21, %22, %23, %24 in 0 : vector<1x16xf32>, vector<1x16xf32>, vector<1x16xf32>, vector<1x16xf32>, vector<1x16xf32>, vector<1x16xf32>, vector<1x16xf32>, vector<1x16xf32> -> vector<8x16xf32>
    %26 = tpu.concatenate %16, %25 in 1 : vector<8x16xf32>, vector<8x16xf32> -> vector<8x32xf32>
    %27 = vector.extract_strided_slice %26 {offsets = [0, 27], sizes = [8, 5], strides = [1, 1]} : vector<8x32xf32> to vector<8x5xf32>
    %28 = vector.extract_strided_slice %26 {offsets = [0, 0], sizes = [8, 27], strides = [1, 1]} : vector<8x32xf32> to vector<8x27xf32>
    %29 = tpu.concatenate %27, %28 in 1 : vector<8x5xf32>, vector<8x27xf32> -> vector<8x32xf32>
    %30 = vector.extract_strided_slice %1 {offsets = [0, 0], sizes = [1, 32], strides = [1, 1]} : vector<9x32xf32> to vector<1x32xf32>
    %31 = vector.broadcast %30 : vector<1x32xf32> to vector<8x32xf32>
    %32 = arith.mulf %29, %31 : vector<8x32xf32>
    %33 = vector.extract_strided_slice %26 {offsets = [0, 28], sizes = [8, 4], strides = [1, 1]} : vector<8x32xf32> to vector<8x4xf32>
    %34 = vector.extract_strided_slice %26 {offsets = [0, 0], sizes = [8, 28], strides = [1, 1]} : vector<8x32xf32> to vector<8x28xf32>
    %35 = tpu.concatenate %33, %34 in 1 : vector<8x4xf32>, vector<8x28xf32> -> vector<8x32xf32>
    %36 = vector.extract_strided_slice %1 {offsets = [1, 0], sizes = [1, 32], strides = [1, 1]} : vector<9x32xf32> to vector<1x32xf32>
    %37 = vector.broadcast %36 : vector<1x32xf32> to vector<8x32xf32>
    %38 = arith.mulf %35, %37 : vector<8x32xf32>
    %39 = vector.extract_strided_slice %26 {offsets = [0, 29], sizes = [8, 3], strides = [1, 1]} : vector<8x32xf32> to vector<8x3xf32>
    %40 = vector.extract_strided_slice %26 {offsets = [0, 0], sizes = [8, 29], strides = [1, 1]} : vector<8x32xf32> to vector<8x29xf32>
    %41 = tpu.concatenate %39, %40 in 1 : vector<8x3xf32>, vector<8x29xf32> -> vector<8x32xf32>
    %42 = vector.extract_strided_slice %1 {offsets = [2, 0], sizes = [1, 32], strides = [1, 1]} : vector<9x32xf32> to vector<1x32xf32>
    %43 = vector.broadcast %42 : vector<1x32xf32> to vector<8x32xf32>
    %44 = arith.mulf %41, %43 : vector<8x32xf32>
    %45 = vector.extract_strided_slice %26 {offsets = [0, 31], sizes = [8, 1], strides = [1, 1]} : vector<8x32xf32> to vector<8x1xf32>
    %46 = vector.extract_strided_slice %26 {offsets = [0, 0], sizes = [8, 31], strides = [1, 1]} : vector<8x32xf32> to vector<8x31xf32>
    %47 = tpu.concatenate %45, %46 in 1 : vector<8x1xf32>, vector<8x31xf32> -> vector<8x32xf32>
    %48 = vector.extract_strided_slice %1 {offsets = [3, 0], sizes = [1, 32], strides = [1, 1]} : vector<9x32xf32> to vector<1x32xf32>
    %49 = vector.broadcast %48 : vector<1x32xf32> to vector<8x32xf32>
    %50 = arith.mulf %47, %49 : vector<8x32xf32>
    %51 = vector.extract_strided_slice %26 {offsets = [0, 1], sizes = [8, 31], strides = [1, 1]} : vector<8x32xf32> to vector<8x31xf32>
    %52 = vector.extract_strided_slice %26 {offsets = [0, 0], sizes = [8, 1], strides = [1, 1]} : vector<8x32xf32> to vector<8x1xf32>
    %53 = tpu.concatenate %51, %52 in 1 : vector<8x31xf32>, vector<8x1xf32> -> vector<8x32xf32>
    %54 = vector.extract_strided_slice %1 {offsets = [5, 0], sizes = [1, 32], strides = [1, 1]} : vector<9x32xf32> to vector<1x32xf32>
    %55 = vector.broadcast %54 : vector<1x32xf32> to vector<8x32xf32>
    %56 = arith.mulf %53, %55 : vector<8x32xf32>
    %57 = vector.extract_strided_slice %26 {offsets = [0, 3], sizes = [8, 29], strides = [1, 1]} : vector<8x32xf32> to vector<8x29xf32>
    %58 = vector.extract_strided_slice %26 {offsets = [0, 0], sizes = [8, 3], strides = [1, 1]} : vector<8x32xf32> to vector<8x3xf32>
    %59 = tpu.concatenate %57, %58 in 1 : vector<8x29xf32>, vector<8x3xf32> -> vector<8x32xf32>
    %60 = vector.extract_strided_slice %1 {offsets = [6, 0], sizes = [1, 32], strides = [1, 1]} : vector<9x32xf32> to vector<1x32xf32>
    %61 = vector.broadcast %60 : vector<1x32xf32> to vector<8x32xf32>
    %62 = arith.mulf %59, %61 : vector<8x32xf32>
    %63 = vector.extract_strided_slice %26 {offsets = [0, 4], sizes = [8, 28], strides = [1, 1]} : vector<8x32xf32> to vector<8x28xf32>
    %64 = vector.extract_strided_slice %26 {offsets = [0, 0], sizes = [8, 4], strides = [1, 1]} : vector<8x32xf32> to vector<8x4xf32>
    %65 = tpu.concatenate %63, %64 in 1 : vector<8x28xf32>, vector<8x4xf32> -> vector<8x32xf32>
    %66 = vector.extract_strided_slice %1 {offsets = [7, 0], sizes = [1, 32], strides = [1, 1]} : vector<9x32xf32> to vector<1x32xf32>
    %67 = vector.broadcast %66 : vector<1x32xf32> to vector<8x32xf32>
    %68 = arith.mulf %65, %67 : vector<8x32xf32>
    %69 = vector.extract_strided_slice %26 {offsets = [0, 5], sizes = [8, 27], strides = [1, 1]} : vector<8x32xf32> to vector<8x27xf32>
    %70 = vector.extract_strided_slice %26 {offsets = [0, 0], sizes = [8, 5], strides = [1, 1]} : vector<8x32xf32> to vector<8x5xf32>
    %71 = tpu.concatenate %69, %70 in 1 : vector<8x27xf32>, vector<8x5xf32> -> vector<8x32xf32>
    %72 = vector.extract_strided_slice %1 {offsets = [8, 0], sizes = [1, 32], strides = [1, 1]} : vector<9x32xf32> to vector<1x32xf32>
    %73 = vector.broadcast %72 : vector<1x32xf32> to vector<8x32xf32>
    %74 = arith.mulf %71, %73 : vector<8x32xf32>
    %75 = tpu.concatenate %32, %38, %44, %50, %26, %56, %62, %68, %74 in 0 : vector<8x32xf32>, vector<8x32xf32>, vector<8x32xf32>, vector<8x32xf32>, vector<8x32xf32>, vector<8x32xf32>, vector<8x32xf32>, vector<8x32xf32>, vector<8x32xf32> -> vector<72x32xf32>
    %76 = vector.extract_strided_slice %0 {offsets = [24, 0], sizes = [16, 72], strides = [1, 1]} : vector<104x128xf32> to vector<16x72xf32>
    %cst_3 = arith.constant dense<0.000000e+00> : vector<16x32xf32>
    %77 = tpu.matmul %76, %75, %cst_3 {dimension_numbers = #tpu.dot_dimension_numbers<[1], [0], [0], [1], [0, 0, 1, 1], [], []>} : vector<16x72xf32>, vector<72x32xf32>, vector<16x32xf32> -> vector<16x32xf32>
    %cst_4 = arith.constant dense<0.000000e+00> : vector<16xf32>
    %78 = vector.multi_reduction <add>, %77, %cst_4 [1] : vector<16x32xf32> to vector<16xf32>
    %79 = vector.shape_cast %78 : vector<16xf32> to vector<16x1xf32>
    %80 = arith.mulf %77, %77 : vector<16x32xf32>
    %cst_5 = arith.constant dense<0.000000e+00> : vector<16xf32>
    %81 = vector.multi_reduction <add>, %80, %cst_5 [1] : vector<16x32xf32> to vector<16xf32>
    %82 = vector.shape_cast %81 : vector<16xf32> to vector<16x1xf32>
    %83 = vector.extract_strided_slice %79 {offsets = [0, 0], sizes = [4, 1], strides = [1, 1]} : vector<16x1xf32> to vector<4x1xf32>
    %84 = vector.extract_strided_slice %79 {offsets = [4, 0], sizes = [4, 1], strides = [1, 1]} : vector<16x1xf32> to vector<4x1xf32>
    %85 = arith.addf %83, %84 : vector<4x1xf32>
    %86 = vector.extract_strided_slice %79 {offsets = [8, 0], sizes = [4, 1], strides = [1, 1]} : vector<16x1xf32> to vector<4x1xf32>
    %87 = arith.addf %85, %86 : vector<4x1xf32>
    %88 = vector.extract_strided_slice %79 {offsets = [12, 0], sizes = [4, 1], strides = [1, 1]} : vector<16x1xf32> to vector<4x1xf32>
    %89 = arith.addf %87, %88 : vector<4x1xf32>
    %90 = vector.extract_strided_slice %82 {offsets = [0, 0], sizes = [4, 1], strides = [1, 1]} : vector<16x1xf32> to vector<4x1xf32>
    %91 = vector.extract_strided_slice %82 {offsets = [4, 0], sizes = [4, 1], strides = [1, 1]} : vector<16x1xf32> to vector<4x1xf32>
    %92 = arith.addf %90, %91 : vector<4x1xf32>
    %93 = vector.extract_strided_slice %82 {offsets = [8, 0], sizes = [4, 1], strides = [1, 1]} : vector<16x1xf32> to vector<4x1xf32>
    %94 = arith.addf %92, %93 : vector<4x1xf32>
    %95 = vector.extract_strided_slice %82 {offsets = [12, 0], sizes = [4, 1], strides = [1, 1]} : vector<16x1xf32> to vector<4x1xf32>
    %96 = arith.addf %94, %95 : vector<4x1xf32>
    %cst_6 = arith.constant 1.280000e+02 : f32
    %97 = vector.broadcast %cst_6 : f32 to vector<4x1xf32>
    %98 = arith.divf %89, %97 : vector<4x1xf32>
    %cst_7 = arith.constant 1.280000e+02 : f32
    %99 = vector.broadcast %cst_7 : f32 to vector<4x1xf32>
    %100 = arith.divf %96, %99 : vector<4x1xf32>
    %101 = arith.mulf %98, %98 : vector<4x1xf32>
    %102 = arith.subf %100, %101 : vector<4x1xf32>
    %103 = vector.extract_strided_slice %0 {offsets = [72, 0], sizes = [4, 1], strides = [1, 1]} : vector<104x128xf32> to vector<4x1xf32>
    %cst_8 = arith.constant 9.99999974E-6 : f32
    %104 = vector.broadcast %cst_8 : f32 to vector<4x1xf32>
    %105 = arith.addf %102, %104 : vector<4x1xf32>
    %106 = math.rsqrt %105 : vector<4x1xf32>
    %107 = arith.mulf %103, %106 : vector<4x1xf32>
    %108 = vector.extract_strided_slice %0 {offsets = [80, 0], sizes = [4, 1], strides = [1, 1]} : vector<104x128xf32> to vector<4x1xf32>
    %109 = arith.mulf %98, %107 : vector<4x1xf32>
    %110 = arith.subf %108, %109 : vector<4x1xf32>
    %111 = tpu.concatenate %107, %107, %107, %107 in 0 : vector<4x1xf32>, vector<4x1xf32>, vector<4x1xf32>, vector<4x1xf32> -> vector<16x1xf32>
    %112 = tpu.concatenate %110, %110, %110, %110 in 0 : vector<4x1xf32>, vector<4x1xf32>, vector<4x1xf32>, vector<4x1xf32> -> vector<16x1xf32>
    %113 = vector.broadcast %111 : vector<16x1xf32> to vector<16x32xf32>
    %114 = arith.mulf %77, %113 : vector<16x32xf32>
    %115 = vector.broadcast %112 : vector<16x1xf32> to vector<16x32xf32>
    %116 = arith.addf %114, %115 : vector<16x32xf32>
    %cst_9 = arith.constant 0.000000e+00 : f32
    %117 = vector.broadcast %cst_9 : f32 to vector<16x32xf32>
    %118 = arith.maximumf %116, %117 : vector<16x32xf32>
    %119 = vector.extract_strided_slice %118 {offsets = [0, 0], sizes = [4, 32], strides = [1, 1]} : vector<16x32xf32> to vector<4x32xf32>
    %120 = vector.extract_strided_slice %118 {offsets = [4, 0], sizes = [4, 32], strides = [1, 1]} : vector<16x32xf32> to vector<4x32xf32>
    %121 = vector.extract_strided_slice %118 {offsets = [8, 0], sizes = [4, 32], strides = [1, 1]} : vector<16x32xf32> to vector<4x32xf32>
    %122 = vector.extract_strided_slice %118 {offsets = [12, 0], sizes = [4, 32], strides = [1, 1]} : vector<16x32xf32> to vector<4x32xf32>
    %123 = vector.extract_strided_slice %122 {offsets = [0, 27], sizes = [4, 5], strides = [1, 1]} : vector<4x32xf32> to vector<4x5xf32>
    %124 = vector.extract_strided_slice %122 {offsets = [0, 0], sizes = [4, 27], strides = [1, 1]} : vector<4x32xf32> to vector<4x27xf32>
    %125 = tpu.concatenate %123, %124 in 1 : vector<4x5xf32>, vector<4x27xf32> -> vector<4x32xf32>
    %126 = vector.extract_strided_slice %1 {offsets = [0, 0], sizes = [1, 32], strides = [1, 1]} : vector<9x32xf32> to vector<1x32xf32>
    %127 = vector.broadcast %126 : vector<1x32xf32> to vector<4x32xf32>
    %128 = arith.mulf %125, %127 : vector<4x32xf32>
    %129 = vector.extract_strided_slice %121 {offsets = [0, 28], sizes = [4, 4], strides = [1, 1]} : vector<4x32xf32> to vector<4x4xf32>
    %130 = vector.extract_strided_slice %121 {offsets = [0, 0], sizes = [4, 28], strides = [1, 1]} : vector<4x32xf32> to vector<4x28xf32>
    %131 = tpu.concatenate %129, %130 in 1 : vector<4x4xf32>, vector<4x28xf32> -> vector<4x32xf32>
    %132 = vector.extract_strided_slice %1 {offsets = [1, 0], sizes = [1, 32], strides = [1, 1]} : vector<9x32xf32> to vector<1x32xf32>
    %133 = vector.broadcast %132 : vector<1x32xf32> to vector<4x32xf32>
    %134 = arith.mulf %131, %133 : vector<4x32xf32>
    %135 = vector.extract_strided_slice %122 {offsets = [0, 28], sizes = [4, 4], strides = [1, 1]} : vector<4x32xf32> to vector<4x4xf32>
    %136 = vector.extract_strided_slice %122 {offsets = [0, 0], sizes = [4, 28], strides = [1, 1]} : vector<4x32xf32> to vector<4x28xf32>
    %137 = tpu.concatenate %135, %136 in 1 : vector<4x4xf32>, vector<4x28xf32> -> vector<4x32xf32>
    %138 = vector.extract_strided_slice %1 {offsets = [1, 0], sizes = [1, 32], strides = [1, 1]} : vector<9x32xf32> to vector<1x32xf32>
    %139 = vector.broadcast %138 : vector<1x32xf32> to vector<4x32xf32>
    %140 = arith.mulf %137, %139 : vector<4x32xf32>
    %141 = vector.extract_strided_slice %120 {offsets = [0, 31], sizes = [4, 1], strides = [1, 1]} : vector<4x32xf32> to vector<4x1xf32>
    %142 = vector.extract_strided_slice %120 {offsets = [0, 0], sizes = [4, 31], strides = [1, 1]} : vector<4x32xf32> to vector<4x31xf32>
    %143 = tpu.concatenate %141, %142 in 1 : vector<4x1xf32>, vector<4x31xf32> -> vector<4x32xf32>
    %144 = vector.extract_strided_slice %1 {offsets = [3, 0], sizes = [1, 32], strides = [1, 1]} : vector<9x32xf32> to vector<1x32xf32>
    %145 = vector.broadcast %144 : vector<1x32xf32> to vector<4x32xf32>
    %146 = arith.mulf %143, %145 : vector<4x32xf32>
    %147 = vector.extract_strided_slice %122 {offsets = [0, 31], sizes = [4, 1], strides = [1, 1]} : vector<4x32xf32> to vector<4x1xf32>
    %148 = vector.extract_strided_slice %122 {offsets = [0, 0], sizes = [4, 31], strides = [1, 1]} : vector<4x32xf32> to vector<4x31xf32>
    %149 = tpu.concatenate %147, %148 in 1 : vector<4x1xf32>, vector<4x31xf32> -> vector<4x32xf32>
    %150 = vector.extract_strided_slice %1 {offsets = [3, 0], sizes = [1, 32], strides = [1, 1]} : vector<9x32xf32> to vector<1x32xf32>
    %151 = vector.broadcast %150 : vector<1x32xf32> to vector<4x32xf32>
    %152 = arith.mulf %149, %151 : vector<4x32xf32>
    %153 = tpu.concatenate %128, %134, %140, %146, %119, %120, %152, %121, %122 in 0 : vector<4x32xf32>, vector<4x32xf32>, vector<4x32xf32>, vector<4x32xf32>, vector<4x32xf32>, vector<4x32xf32>, vector<4x32xf32>, vector<4x32xf32>, vector<4x32xf32> -> vector<36x32xf32>
    %154 = vector.extract_strided_slice %121 {offsets = [0, 29], sizes = [4, 3], strides = [1, 1]} : vector<4x32xf32> to vector<4x3xf32>
    %155 = vector.extract_strided_slice %121 {offsets = [0, 0], sizes = [4, 29], strides = [1, 1]} : vector<4x32xf32> to vector<4x29xf32>
    %156 = tpu.concatenate %154, %155 in 1 : vector<4x3xf32>, vector<4x29xf32> -> vector<4x32xf32>
    %157 = vector.extract_strided_slice %1 {offsets = [2, 0], sizes = [1, 32], strides = [1, 1]} : vector<9x32xf32> to vector<1x32xf32>
    %158 = vector.broadcast %157 : vector<1x32xf32> to vector<4x32xf32>
    %159 = arith.mulf %156, %158 : vector<4x32xf32>
    %160 = vector.extract_strided_slice %119 {offsets = [0, 1], sizes = [4, 31], strides = [1, 1]} : vector<4x32xf32> to vector<4x31xf32>
    %161 = vector.extract_strided_slice %119 {offsets = [0, 0], sizes = [4, 1], strides = [1, 1]} : vector<4x32xf32> to vector<4x1xf32>
    %162 = tpu.concatenate %160, %161 in 1 : vector<4x31xf32>, vector<4x1xf32> -> vector<4x32xf32>
    %163 = vector.extract_strided_slice %1 {offsets = [5, 0], sizes = [1, 32], strides = [1, 1]} : vector<9x32xf32> to vector<1x32xf32>
    %164 = vector.broadcast %163 : vector<1x32xf32> to vector<4x32xf32>
    %165 = arith.mulf %162, %164 : vector<4x32xf32>
    %166 = vector.extract_strided_slice %121 {offsets = [0, 1], sizes = [4, 31], strides = [1, 1]} : vector<4x32xf32> to vector<4x31xf32>
    %167 = vector.extract_strided_slice %121 {offsets = [0, 0], sizes = [4, 1], strides = [1, 1]} : vector<4x32xf32> to vector<4x1xf32>
    %168 = tpu.concatenate %166, %167 in 1 : vector<4x31xf32>, vector<4x1xf32> -> vector<4x32xf32>
    %169 = vector.extract_strided_slice %1 {offsets = [5, 0], sizes = [1, 32], strides = [1, 1]} : vector<9x32xf32> to vector<1x32xf32>
    %170 = vector.broadcast %169 : vector<1x32xf32> to vector<4x32xf32>
    %171 = arith.mulf %168, %170 : vector<4x32xf32>
    %172 = tpu.concatenate %134, %140, %159, %119, %120, %165, %121, %122, %171 in 0 : vector<4x32xf32>, vector<4x32xf32>, vector<4x32xf32>, vector<4x32xf32>, vector<4x32xf32>, vector<4x32xf32>, vector<4x32xf32>, vector<4x32xf32>, vector<4x32xf32> -> vector<36x32xf32>
    %173 = vector.extract_strided_slice %120 {offsets = [0, 3], sizes = [4, 29], strides = [1, 1]} : vector<4x32xf32> to vector<4x29xf32>
    %174 = vector.extract_strided_slice %120 {offsets = [0, 0], sizes = [4, 3], strides = [1, 1]} : vector<4x32xf32> to vector<4x3xf32>
    %175 = tpu.concatenate %173, %174 in 1 : vector<4x29xf32>, vector<4x3xf32> -> vector<4x32xf32>
    %176 = vector.extract_strided_slice %1 {offsets = [6, 0], sizes = [1, 32], strides = [1, 1]} : vector<9x32xf32> to vector<1x32xf32>
    %177 = vector.broadcast %176 : vector<1x32xf32> to vector<4x32xf32>
    %178 = arith.mulf %175, %177 : vector<4x32xf32>
    %179 = vector.extract_strided_slice %119 {offsets = [0, 4], sizes = [4, 28], strides = [1, 1]} : vector<4x32xf32> to vector<4x28xf32>
    %180 = vector.extract_strided_slice %119 {offsets = [0, 0], sizes = [4, 4], strides = [1, 1]} : vector<4x32xf32> to vector<4x4xf32>
    %181 = tpu.concatenate %179, %180 in 1 : vector<4x28xf32>, vector<4x4xf32> -> vector<4x32xf32>
    %182 = vector.extract_strided_slice %1 {offsets = [7, 0], sizes = [1, 32], strides = [1, 1]} : vector<9x32xf32> to vector<1x32xf32>
    %183 = vector.broadcast %182 : vector<1x32xf32> to vector<4x32xf32>
    %184 = arith.mulf %181, %183 : vector<4x32xf32>
    %185 = vector.extract_strided_slice %120 {offsets = [0, 4], sizes = [4, 28], strides = [1, 1]} : vector<4x32xf32> to vector<4x28xf32>
    %186 = vector.extract_strided_slice %120 {offsets = [0, 0], sizes = [4, 4], strides = [1, 1]} : vector<4x32xf32> to vector<4x4xf32>
    %187 = tpu.concatenate %185, %186 in 1 : vector<4x28xf32>, vector<4x4xf32> -> vector<4x32xf32>
    %188 = vector.extract_strided_slice %1 {offsets = [7, 0], sizes = [1, 32], strides = [1, 1]} : vector<9x32xf32> to vector<1x32xf32>
    %189 = vector.broadcast %188 : vector<1x32xf32> to vector<4x32xf32>
    %190 = arith.mulf %187, %189 : vector<4x32xf32>
    %191 = tpu.concatenate %146, %119, %120, %152, %121, %122, %178, %184, %190 in 0 : vector<4x32xf32>, vector<4x32xf32>, vector<4x32xf32>, vector<4x32xf32>, vector<4x32xf32>, vector<4x32xf32>, vector<4x32xf32>, vector<4x32xf32>, vector<4x32xf32> -> vector<36x32xf32>
    %192 = vector.extract_strided_slice %119 {offsets = [0, 5], sizes = [4, 27], strides = [1, 1]} : vector<4x32xf32> to vector<4x27xf32>
    %193 = vector.extract_strided_slice %119 {offsets = [0, 0], sizes = [4, 5], strides = [1, 1]} : vector<4x32xf32> to vector<4x5xf32>
    %194 = tpu.concatenate %192, %193 in 1 : vector<4x27xf32>, vector<4x5xf32> -> vector<4x32xf32>
    %195 = vector.extract_strided_slice %1 {offsets = [8, 0], sizes = [1, 32], strides = [1, 1]} : vector<9x32xf32> to vector<1x32xf32>
    %196 = vector.broadcast %195 : vector<1x32xf32> to vector<4x32xf32>
    %197 = arith.mulf %194, %196 : vector<4x32xf32>
    %198 = tpu.concatenate %119, %120, %165, %121, %122, %171, %184, %190, %197 in 0 : vector<4x32xf32>, vector<4x32xf32>, vector<4x32xf32>, vector<4x32xf32>, vector<4x32xf32>, vector<4x32xf32>, vector<4x32xf32>, vector<4x32xf32>, vector<4x32xf32> -> vector<36x32xf32>
    %199 = tpu.concatenate %153, %172, %191, %198 in 1 : vector<36x32xf32>, vector<36x32xf32>, vector<36x32xf32>, vector<36x32xf32> -> vector<36x128xf32>
    %200 = vector.extract_strided_slice %0 {offsets = [40, 0], sizes = [12, 36], strides = [1, 1]} : vector<104x128xf32> to vector<12x36xf32>
    %cst_10 = arith.constant dense<0.000000e+00> : vector<12x128xf32>
    %201 = tpu.matmul %200, %199, %cst_10 {dimension_numbers = #tpu.dot_dimension_numbers<[1], [0], [0], [1], [0, 0, 1, 1], [], []>} : vector<12x36xf32>, vector<36x128xf32>, vector<12x128xf32> -> vector<12x128xf32>
    %202 = vector.extract_strided_slice %0 {offsets = [88, 0], sizes = [12, 1], strides = [1, 1]} : vector<104x128xf32> to vector<12x1xf32>
    %203 = vector.broadcast %202 : vector<12x1xf32> to vector<12x128xf32>
    %204 = arith.addf %201, %203 : vector<12x128xf32>
    %205 = arith.negf %204 : vector<12x128xf32>
    %206 = math.exp %205 : vector<12x128xf32>
    %cst_11 = arith.constant 1.000000e+00 : f32
    %207 = vector.broadcast %cst_11 : f32 to vector<12x128xf32>
    %208 = arith.addf %207, %206 : vector<12x128xf32>
    %209 = arith.divf %207, %208 : vector<12x128xf32>
    %c0_12 = arith.constant 0 : index
    %c0_13 = arith.constant 0 : index
    %210 = vector.load %arg2[%c0_12, %c0_13] : memref<12x128xf32, #tpu.memory_space<vmem>>, vector<12x128xf32>
    tpu.vector_store %arg2[%c0_12, %c0_13], %209 {strides = array<i32>} : memref<12x128xf32, #tpu.memory_space<vmem>>, vector<12x128xf32>,
    return
  }
}

</mosaic_0001>

<llo_original>
// kernel: _decoder_call.1
$region0: #{_decoder_call.1}
  #allocation0 [shape = 'u32[]', space=smem, size = 0x4, offset = 0x4, fixed_abs, tag = 'smem constant byte address 0x4 - core index']
  #allocation1 [shape = 'u32[144,128]{1,0:T(1,128)}', space=vmem, size = 0x12000, scoped, tag = 'internal scratch']
  %s0 = inlined_call_operand.hbm [shape: f32[2,16], index: 0, kind: input, shape index: {}]
  %s1 = inlined_call_operand.hbm [shape: f32[104,128], index: 1, kind: input, shape index: {}]
  %s2 = inlined_call_operand.vmem [shape: f32[12,128], index: 2, kind: output, shape index: {}]
  %s3 = sld [smem:[#allocation0]]
  $region26: #{_decoder_call.1} parent=0
    _
  %s5 = ssub.s32 1, %s3
  %s6 = scalar_select 0, %s5, %s3
  $region1: #{_decoder_call.1} parent=0
    #allocation2 [shape = 'u8[1024]{0}', space=vmem, size = 0x400, scoped, tag = 'input window, operand 0, single buffered']
    #allocation3 [shape = 's32[1]{0}', space=sflag, size = 0x4, scoped, tag = 'scoped memory for _decoder_call.1']
    #allocation4 [shape = 'u8[53248]{0}', space=vmem, size = 0xd000, scoped, tag = 'input window, operand 1, single buffered']
    #allocation5 [shape = 's32[1]{0}', space=sflag, size = 0x4, scoped, tag = 'scoped memory for _decoder_call.1']
    %7 = vsyncpa [#allocation3], 0
    %8 = vsyncpa [#allocation5], 0
    // Predicated region
    $region2: #{_decoder_call.1} parent=1 // pred_check
      _
    $region3: #{_decoder_call.1} parent=1 // pred_check_branch
      %10 = sbr.rel (0) target = $region5
    $region4: #{_decoder_call.1} parent=1 // pred_region
      %s12 = ssub.s32 32, 32
      %13 = vsyncadd [#allocation3], %s12
      %s15 = sshll.u32 [#allocation2], 4
      %s16 = int_to_ptr.vmem [resolvable:$true] %s15
      %18 = dma.hbm_to_vmem [thread:$0]  %s0, 32, %s16, [#allocation3]
    $region5: #{_decoder_call.1} parent=1 // pred_fallthru
      _
    // Predicated region
    $region6: #{_decoder_call.1} parent=1 // pred_check
      _
    $region7: #{_decoder_call.1} parent=1 // pred_check_branch
      %20 = sbr.rel (0) target = $region9
    $region8: #{_decoder_call.1} parent=1 // pred_region
      %s22 = ssub.s32 1664, 1664
      %23 = vsyncadd [#allocation5], %s22
      %s24 = sshll.u32 [#allocation4], 4
      %s25 = int_to_ptr.vmem [resolvable:$true] %s24
      %30 = dma.hbm_to_vmem [thread:$0]  %s1, 1664, %s25, [#allocation5], 128, 128, 8
    $region9: #{_decoder_call.1} parent=1 // pred_fallthru
      _
    // Predicated region
    $region10: #{_decoder_call.1} parent=1 // pred_check
      _
    $region11: #{_decoder_call.1} parent=1 // pred_check_branch
      %32 = sbr.rel (0) target = $region13
    $region12: #{_decoder_call.1} parent=1 // pred_region
      %33 = dma.done [#allocation3], 32
    $region13: #{_decoder_call.1} parent=1 // pred_fallthru
      _
    // Predicated region
    $region14: #{_decoder_call.1} parent=1 // pred_check
      _
    $region15: #{_decoder_call.1} parent=1 // pred_check_branch
      %35 = sbr.rel (0) target = $region17
    $region16: #{_decoder_call.1} parent=1 // pred_region
      %36 = dma.done [#allocation5], 1664
    $region17: #{_decoder_call.1} parent=1 // pred_fallthru
      _
    %v37 = vld [vmem:[#allocation4] sm:$0xff]
    %v38 = vld [vmem:[#allocation4 + $0x8] sm:$0xff]
    %v39 = vld [vmem:[#allocation4 + $0x10] sm:$0xff]
    %v40 = vld [vmem:[#allocation4 + $0x18] sm:$0xff]
    %v41 = vld [vmem:[#allocation4 + $0x20] sm:$0xff]
    %v42 = vld [vmem:[#allocation4 + $0x28] sm:$0xff]
    %v43 = vld [vmem:[#allocation4 + $0x30] sm:$0xff]
    %v44 = vld [vmem:[#allocation4 + $0x38] sm:$0xff]
    %v45 = vld [vmem:[#allocation4 + $0x40] sm:$0xff]
    %v46 = vld [vmem:[#allocation4 + $0x48] sm:$0xff]
    %v47 = vld [vmem:[#allocation4 + $0x50] sm:$0xff]
    %v48 = vld [vmem:[#allocation4 + $0x58] sm:$0xff]
    %v49 = vld [vmem:[#allocation4 + $0x60] sm:$0xff]
    %v50 = vld [vmem:[#allocation2] sm:$0x3]
    %v51 = vlaneseq
    %v52 = vshrl.u32 %v51, 7
    %v53 = vsub.s32 0, %v52
    %v54 = vrot.slane %v39, %v53
    %vm55 = vcmask 130048
    %v57 = vsel %vm55, %v50, 0
    %59 = vmatprep.subr.mxu0 0.0
    %60 = vmatpush1.msra.mxu0 %v37
    %61 = vmatprep.subr.mxu0 0.0
    %62 = vmatpush1.msra.mxu0 %v38
    %63 = vmatprep.subr.mxu0 0.0
    %64 = vmatpush1.msra.mxu0 0.0
    %65 = vmatprep.subr.mxu0 0.0
    %66 = vmatpush1.msra.mxu0 0.0
    %67 = vmatprep.subr.mxu0 0.0
    %68 = vmatpush1.msra.mxu0 0.0
    %69 = vmatprep.subr.mxu0 0.0
    %70 = vmatpush1.msra.mxu0 0.0
    %71 = vmatprep.subr.mxu0 0.0
    %72 = vmatpush1.msra.mxu0 0.0
    %73 = vmatprep.subr.mxu0 0.0
    %74 = vmatpush1.msra.mxu0 0.0
    %75 = vmatprep.subr.mxu0 0.0
    %76 = vmatpush1.msra.mxu0 0.0
    %77 = vmatprep.subr.mxu0 0.0
    %78 = vmatpush1.msra.mxu0 0.0
    %79 = vmatprep.subr.mxu0 0.0
    %80 = vmatpush1.msra.mxu0 0.0
    %81 = vmatprep.subr.mxu0 0.0
    %82 = vmatpush1.msra.mxu0 0.0
    %83 = vmatprep.subr.mxu0 0.0
    %84 = vmatpush1.msra.mxu0 0.0
    %85 = vmatprep.subr.mxu0 0.0
    %86 = vmatpush1.msra.mxu0 0.0
    %87 = vmatprep.subr.mxu0 0.0
    %88 = vmatpush1.msra.mxu0 0.0
    %89 = vmatprep.subr.mxu0 0.0
    %90 = vmatpush1.msra.mxu0 0.0
    %91 = vmatprep.subr.mxu0 0.0
    %92 = vmatpush1.msra.mxu0 0.0
    %93 = vmatprep.subr.mxu0 0.0
    %94 = vmatpush1.msra.mxu0 0.0
    %95 = vmatprep.subr.mxu0 0.0
    %96 = vmatpush1.msra.mxu0 0.0
    %97 = vmatprep.subr.mxu0 0.0
    %98 = vmatpush1.msra.mxu0 0.0
    %99 = vmatprep.subr.mxu0 0.0
    %100 = vmatpush1.msra.mxu0 0.0
    %101 = vmatprep.subr.mxu0 0.0
    %102 = vmatpush1.msra.mxu0 0.0
    %103 = vmatprep.subr.mxu0 0.0
    %104 = vmatpush1.msra.mxu0 0.0
    %105 = vmatprep.subr.mxu0 0.0
    %106 = vmatpush1.msra.mxu0 0.0
    %107 = vmatprep.subr.mxu0 0.0
    %108 = vmatpush1.msra.mxu0 0.0
    %109 = vmatprep.subr.mxu0 0.0
    %110 = vmatpush1.msra.mxu0 0.0
    %111 = vmatprep.subr.mxu0 0.0
    %112 = vmatpush1.msra.mxu0 0.0
    %113 = vmatprep.subr.mxu0 0.0
    %114 = vmatpush1.msra.mxu0 0.0
    %115 = vmatprep.subr.mxu0 0.0
    %116 = vmatpush1.msra.mxu0 0.0
    %117 = vmatprep.subr.mxu0 0.0
    %118 = vmatpush1.msra.mxu0 0.0
    %119 = vmatprep.subr.mxu0 0.0
    %120 = vmatpush1.msra.mxu0 0.0
    %121 = vmatprep.subr.mxu0 0.0
    %122 = vmatpush1.msra.mxu0 0.0
    %123 = vmatprep.mubr.f32.mxu0 0.0
    %124 = vmatmul.mubr.f32.gmra.mrb[0].mxu0 %v57
    %v125 = vpop.f32.mrb[0].mxu0
    %v126 = vadd.f32 %v54, %v125
    %v127 = vpop.f32.mrb[0].mxu0
    %128 = vdwg.mxu0
    %v130 = vrot.slane %v126, 7
    %131 = vrot.lane.b32.xlu0 %v130, 112
    %v132 = vpop.permute.xlu0 %131
    %v134 = vrot.slane %v126, 6
    %135 = vrot.lane.b32.xlu0 %v134, 96
    %v136 = vpop.permute.xlu0 %135
    %v138 = vrot.slane %v126, 5
    %139 = vrot.lane.b32.xlu0 %v138, 80
    %v140 = vpop.permute.xlu0 %139
    %v142 = vrot.slane %v126, 4
    %143 = vrot.lane.b32.xlu0 %v142, 64
    %v144 = vpop.permute.xlu0 %143
    %v146 = vrot.slane %v126, 3
    %147 = vrot.lane.b32.xlu0 %v146, 48
    %v148 = vpop.permute.xlu0 %147
    %v150 = vrot.slane %v126, 2
    %151 = vrot.lane.b32.xlu0 %v150, 32
    %v152 = vpop.permute.xlu0 %151
    %v154 = vrot.slane %v126, 1
    %155 = vrot.lane.b32.xlu0 %v154, 16
    %v156 = vpop.permute.xlu0 %155
    %vm158 = vcmask 1040384
    %v159 = vsel %vm158, %v126, %v132
    %vm160 = vcmask 1041408
    %v161 = vsel %vm160, %v159, %v136
    %vm162 = vcmask 1042432
    %v163 = vsel %vm162, %v161, %v140
    %vm164 = vcmask 1043456
    %v165 = vsel %vm164, %v163, %v144
    %vm166 = vcmask 1044480
    %v167 = vsel %vm166, %v165, %v148
    %vm168 = vcmask 1045504
    %v169 = vsel %vm168, %v167, %v152
    %vm170 = vcmask 1046528
    %v171 = vsel %vm170, %v169, %v156
    %173 = vrot.lane.b32.xlu0 %v126, 112
    %v174 = vpop.permute.xlu0 %173
    %176 = vrot.lane.b32.xlu0 %v130, 96
    %v177 = vpop.permute.xlu0 %176
    %179 = vrot.lane.b32.xlu0 %v134, 80
    %v180 = vpop.permute.xlu0 %179
    %182 = vrot.lane.b32.xlu0 %v138, 64
    %v183 = vpop.permute.xlu0 %182
    %185 = vrot.lane.b32.xlu0 %v142, 48
    %v186 = vpop.permute.xlu0 %185
    %188 = vrot.lane.b32.xlu0 %v146, 32
    %v189 = vpop.permute.xlu0 %188
    %191 = vrot.lane.b32.xlu0 %v150, 16
    %v192 = vpop.permute.xlu0 %191
    %v194 = vsel %vm158, %v154, %v174
    %v195 = vsel %vm160, %v194, %v177
    %v196 = vsel %vm162, %v195, %v180
    %v197 = vsel %vm164, %v196, %v183
    %v198 = vsel %vm166, %v197, %v186
    %v199 = vsel %vm168, %v198, %v189
    %v200 = vsel %vm170, %v199, %v192
    %202 = vrot.lane.b32.xlu0 %v200, 16
    %v203 = vpop.permute.xlu0 %202
    %v205 = vsel %vm55, %v171, %v203
    %207 = vrot.lane.b32.xlu0 %v205, 101
    %v208 = vpop.permute.xlu0 %207
    %210 = vrot.lane.b32.xlu0 %v205, 5
    %v211 = vpop.permute.xlu0 %210
    %vm213 = vcmask 39936
    %v214 = vsel %vm213, %v208, %v211
    %v215 = vlaneseq
    %v216 = vshrl.u32 %v215, 7
    %v217 = vsub.s32 0, %v216
    %v218 = vrot.slane %v44, %v217
    %v219 = vmul.f32 %v214, %v218
    %220 = vrot.lane.b32.xlu0 %v205, 100
    %v221 = vpop.permute.xlu0 %220
    %223 = vrot.lane.b32.xlu0 %v205, 4
    %v224 = vpop.permute.xlu0 %223
    %vm226 = vcmask 31744
    %v227 = vsel %vm226, %v221, %v224
    %v228 = vlaneseq
    %v229 = vshrl.u32 %v228, 7
    %v230 = vsub.s32 1, %v229
    %v231 = vrot.slane %v44, %v230
    %v232 = vmul.f32 %v227, %v231
    %233 = vrot.lane.b32.xlu0 %v205, 99
    %v234 = vpop.permute.xlu0 %233
    %236 = vrot.lane.b32.xlu0 %v205, 3
    %v237 = vpop.permute.xlu0 %236
    %vm239 = vcmask 23552
    %v240 = vsel %vm239, %v234, %v237
    %v241 = vlaneseq
    %v242 = vshrl.u32 %v241, 7
    %v243 = vsub.s32 2, %v242
    %v244 = vrot.slane %v44, %v243
    %v245 = vmul.f32 %v240, %v244
    %246 = vrot.lane.b32.xlu0 %v205, 97
    %v247 = vpop.permute.xlu0 %246
    %249 = vrot.lane.b32.xlu0 %v205, 1
    %v250 = vpop.permute.xlu0 %249
    %vm252 = vcmask 7168
    %v253 = vsel %vm252, %v247, %v250
    %v254 = vlaneseq
    %v255 = vshrl.u32 %v254, 7
    %v256 = vsub.s32 3, %v255
    %v257 = vrot.slane %v44, %v256
    %v258 = vmul.f32 %v253, %v257
    %259 = vrot.lane.b32.xlu0 %v205, 127
    %v260 = vpop.permute.xlu0 %259
    %262 = vrot.lane.b32.xlu0 %v205, 31
    %v263 = vpop.permute.xlu0 %262
    %vm265 = vcmask 252928
    %v266 = vsel %vm265, %v260, %v263
    %v267 = vlaneseq
    %v268 = vshrl.u32 %v267, 7
    %v269 = vsub.s32 5, %v268
    %v270 = vrot.slane %v44, %v269
    %v271 = vmul.f32 %v266, %v270
    %272 = vrot.lane.b32.xlu0 %v205, 125
    %v273 = vpop.permute.xlu0 %272
    %275 = vrot.lane.b32.xlu0 %v205, 29
    %v276 = vpop.permute.xlu0 %275
    %vm278 = vcmask 236544
    %v279 = vsel %vm278, %v273, %v276
    %v280 = vlaneseq
    %v281 = vshrl.u32 %v280, 7
    %v282 = vsub.s32 6, %v281
    %v283 = vrot.slane %v44, %v282
    %v284 = vmul.f32 %v279, %v283
    %285 = vrot.lane.b32.xlu0 %v205, 124
    %v286 = vpop.permute.xlu0 %285
    %288 = vrot.lane.b32.xlu0 %v205, 28
    %v289 = vpop.permute.xlu0 %288
    %vm291 = vcmask 228352
    %v292 = vsel %vm291, %v286, %v289
    %v293 = vlaneseq
    %v294 = vshrl.u32 %v293, 7
    %v295 = vsub.s32 7, %v294
    %v296 = vrot.slane %v44, %v295
    %v297 = vmul.f32 %v292, %v296
    %298 = vrot.lane.b32.xlu0 %v205, 123
    %v299 = vpop.permute.xlu0 %298
    %301 = vrot.lane.b32.xlu0 %v205, 27
    %v302 = vpop.permute.xlu0 %301
    %vm304 = vcmask 220160
    %v305 = vsel %vm304, %v299, %v302
    %v306 = vlaneseq
    %v307 = vshrl.u32 %v306, 7
    %v308 = vsub.s32 0, %v307
    %v309 = vrot.slane %v45, %v308
    %v310 = vmul.f32 %v305, %v309
    %vm311 = vcmask 588800
    %v313 = vsel %vm311, %v40, 0
    %v316 = vsel %vm311, %v41, 0
    %318 = vmatprep.subr.mxu0 0.0
    %319 = vmatpush1.msra.mxu0 %v219
    %320 = vmatprep.subr.mxu0 0.0
    %321 = vmatpush1.msra.mxu0 %v232
    %322 = vmatprep.subr.mxu0 0.0
    %323 = vmatpush1.msra.mxu0 %v245
    %324 = vmatprep.subr.mxu0 0.0
    %325 = vmatpush1.msra.mxu0 %v258
    %326 = vmatprep.subr.mxu0 0.0
    %327 = vmatpush1.msra.mxu0 %v205
    %328 = vmatprep.subr.mxu0 0.0
    %329 = vmatpush1.msra.mxu0 %v271
    %330 = vmatprep.subr.mxu0 0.0
    %331 = vmatpush1.msra.mxu0 %v284
    %332 = vmatprep.subr.mxu0 0.0
    %333 = vmatpush1.msra.mxu0 %v297
    %334 = vmatprep.subr.mxu0 0.0
    %335 = vmatpush1.msra.mxu0 %v310
    %336 = vmatprep.subr.mxu0 0.0
    %337 = vmatpush1.msra.mxu0 0.0
    %338 = vmatprep.subr.mxu0 0.0
    %339 = vmatpush1.msra.mxu0 0.0
    %340 = vmatprep.subr.mxu0 0.0
    %341 = vmatpush1.msra.mxu0 0.0
    %342 = vmatprep.subr.mxu0 0.0
    %343 = vmatpush1.msra.mxu0 0.0
    %344 = vmatprep.subr.mxu0 0.0
    %345 = vmatpush1.msra.mxu0 0.0
    %346 = vmatprep.subr.mxu0 0.0
    %347 = vmatpush1.msra.mxu0 0.0
    %348 = vmatprep.subr.mxu0 0.0
    %349 = vmatpush1.msra.mxu0 0.0
    %350 = vmatprep.subr.mxu0 0.0
    %351 = vmatpush1.msra.mxu0 0.0
    %352 = vmatprep.subr.mxu0 0.0
    %353 = vmatpush1.msra.mxu0 0.0
    %354 = vmatprep.subr.mxu0 0.0
    %355 = vmatpush1.msra.mxu0 0.0
    %356 = vmatprep.subr.mxu0 0.0
    %357 = vmatpush1.msra.mxu0 0.0
    %358 = vmatprep.subr.mxu0 0.0
    %359 = vmatpush1.msra.mxu0 0.0
    %360 = vmatprep.subr.mxu0 0.0
    %361 = vmatpush1.msra.mxu0 0.0
    %362 = vmatprep.subr.mxu0 0.0
    %363 = vmatpush1.msra.mxu0 0.0
    %364 = vmatprep.subr.mxu0 0.0
    %365 = vmatpush1.msra.mxu0 0.0
    %366 = vmatprep.subr.mxu0 0.0
    %367 = vmatpush1.msra.mxu0 0.0
    %368 = vmatprep.subr.mxu0 0.0
    %369 = vmatpush1.msra.mxu0 0.0
    %370 = vmatprep.subr.mxu0 0.0
    %371 = vmatpush1.msra.mxu0 0.0
    %372 = vmatprep.subr.mxu0 0.0
    %373 = vmatpush1.msra.mxu0 0.0
    %374 = vmatprep.subr.mxu0 0.0
    %375 = vmatpush1.msra.mxu0 0.0
    %376 = vmatprep.subr.mxu0 0.0
    %377 = vmatpush1.msra.mxu0 0.0
    %378 = vmatprep.subr.mxu0 0.0
    %379 = vmatpush1.msra.mxu0 0.0
    %380 = vmatprep.subr.mxu0 0.0
    %381 = vmatpush1.msra.mxu0 0.0
    %382 = vmatprep.mubr.f32.mxu0 0.0
    %383 = vmatmul.mubr.f32.gmra.mrb[0].mxu0 %v313
    %v384 = vpop.f32.mrb[0].mxu0
    %v385 = vadd.f32 0.0, %v384
    %v386 = vpop.f32.mrb[0].mxu0
    %387 = vmatprep.mubr.f32.mxu0 0.0
    %388 = vmatmul.mubr.f32.gmra.mrb[0].mxu0 %v316
    %v389 = vpop.f32.mrb[0].mxu0
    %v390 = vadd.f32 0.0, %v389
    %v391 = vpop.f32.mrb[0].mxu0
    %392 = vdwg.mxu0
    %vm393 = vcmask 261120
    %v394 = vsel %vm393, %v385, 0.0
    %395 = vadd.xlane.f32.xlu0 %v394
    %v396 = vpop.xlane.xlu0 %395
    %v397 = vsel %vm393, %v390, 0.0
    %398 = vadd.xlane.f32.xlu0 %v397
    %v399 = vpop.xlane.xlu0 %398
    %v400 = vmul.f32 %v385, %v385
    %v401 = vmul.f32 %v390, %v390
    %v402 = vsel %vm393, %v400, 0.0
    %403 = vadd.xlane.f32.xlu0 %v402
    %v404 = vpop.xlane.xlu0 %403
    %v405 = vsel %vm393, %v401, 0.0
    %406 = vadd.xlane.f32.xlu0 %v405
    %v407 = vpop.xlane.xlu0 %406
    %v409 = vrot.slane %v396, 4
    %v411 = vadd.f32 %v396, %v409
    %v412 = vadd.f32 %v411, %v399
    %v414 = vrot.slane %v399, 4
    %v416 = vadd.f32 %v412, %v414
    %v418 = vrot.slane %v404, 4
    %v420 = vadd.f32 %v404, %v418
    %v421 = vadd.f32 %v420, %v407
    %v423 = vrot.slane %v407, 4
    %v425 = vadd.f32 %v421, %v423
    %v426 = vrcp.pop 128.0
    %v427 = vmul.f32 %v416, %v426
    %v428 = vmul.f32 %v425, %v426
    %v429 = vmul.f32 %v427, %v427
    %v430 = vsub.f32 %v428, %v429
    %v431 = vadd.f32 %v430, 1e-05
    %v432 = vrsqrt.pop %v431
    %v433 = vmul.f32 %v46, %v432
    %v434 = vmul.f32 %v427, %v433
    %v435 = vsub.f32 %v47, %v434
    %v437 = vrot.slane %v433, 4
    %v439 = vsel %vm164, %v433, %v437
    %v441 = vrot.slane %v435, 4
    %v443 = vsel %vm164, %v435, %v441
    %445 = vset.pattern.permute.xlu0 0
    %446 = vperm.xlu0 %445, %v439
    %v447 = vpop.permute.xlu0 %446
    %v449 = vmul.f32 %v385, %v447
    %v450 = vmul.f32 %v390, %v447
    %452 = vset.pattern.permute.xlu0 0
    %453 = vperm.xlu0 %452, %v443
    %v454 = vpop.permute.xlu0 %453
    %v456 = vadd.f32 %v449, %v454
    %v457 = vadd.f32 %v450, %v454
    %v458 = vmax.f32 %v456, 0.0
    %v459 = vmax.f32 %v457, 0.0
    %461 = vrot.lane.b32.xlu0 %v459, 101
    %v462 = vpop.permute.xlu0 %461
    %464 = vrot.lane.b32.xlu0 %v459, 5
    %v465 = vpop.permute.xlu0 %464
    %v467 = vsel %vm213, %v462, %v465
    %v468 = vmul.f32 %v467, %v218
    %469 = vrot.lane.b32.xlu0 %v459, 100
    %v470 = vpop.permute.xlu0 %469
    %472 = vrot.lane.b32.xlu0 %v459, 4
    %v473 = vpop.permute.xlu0 %472
    %v475 = vsel %vm226, %v470, %v473
    %v476 = vmul.f32 %v475, %v231
    %478 = vrot.lane.b32.xlu0 %v458, 97
    %v479 = vpop.permute.xlu0 %478
    %481 = vrot.lane.b32.xlu0 %v458, 1
    %v482 = vpop.permute.xlu0 %481
    %v484 = vsel %vm252, %v479, %v482
    %v485 = vmul.f32 %v484, %v257
    %486 = vrot.lane.b32.xlu0 %v459, 97
    %v487 = vpop.permute.xlu0 %486
    %489 = vrot.lane.b32.xlu0 %v459, 1
    %v490 = vpop.permute.xlu0 %489
    %v492 = vsel %vm252, %v487, %v490
    %v493 = vmul.f32 %v492, %v257
    %v495 = vrot.slane %v468, 4
    %v498 = vrot.slane %v476, 4
    %v501 = vrot.slane %v493, 4
    %v503 = vrot.slane %v459, 4
    %v505 = vsel %vm164, %v495, %v498
    %v506 = vsel %vm164, %v498, %v485
    %v507 = vsel %vm164, %v501, %v503
    %508 = vrot.lane.b32.xlu0 %v459, 99
    %v509 = vpop.permute.xlu0 %508
    %511 = vrot.lane.b32.xlu0 %v459, 3
    %v512 = vpop.permute.xlu0 %511
    %v514 = vsel %vm239, %v509, %v512
    %v515 = vmul.f32 %v514, %v244
    %516 = vrot.lane.b32.xlu0 %v458, 127
    %v517 = vpop.permute.xlu0 %516
    %519 = vrot.lane.b32.xlu0 %v458, 31
    %v520 = vpop.permute.xlu0 %519
    %v522 = vsel %vm265, %v517, %v520
    %v523 = vmul.f32 %v522, %v270
    %524 = vrot.lane.b32.xlu0 %v459, 127
    %v525 = vpop.permute.xlu0 %524
    %527 = vrot.lane.b32.xlu0 %v459, 31
    %v528 = vpop.permute.xlu0 %527
    %v530 = vsel %vm265, %v525, %v528
    %v531 = vmul.f32 %v530, %v270
    %v532 = vrot.slane %v458, 4
    %v535 = vrot.slane %v523, 4
    %v537 = vsel %vm164, %v515, %v532
    %v538 = vsel %vm164, %v532, %v535
    %539 = vrot.lane.b32.xlu0 %v458, 125
    %v540 = vpop.permute.xlu0 %539
    %542 = vrot.lane.b32.xlu0 %v458, 29
    %v543 = vpop.permute.xlu0 %542
    %v545 = vsel %vm278, %v540, %v543
    %v546 = vmul.f32 %v545, %v283
    %547 = vrot.lane.b32.xlu0 %v458, 124
    %v548 = vpop.permute.xlu0 %547
    %550 = vrot.lane.b32.xlu0 %v458, 28
    %v551 = vpop.permute.xlu0 %550
    %v553 = vsel %vm291, %v548, %v551
    %v554 = vmul.f32 %v553, %v296
    %v556 = vrot.slane %v485, 4
    %v559 = vrot.slane %v546, 4
    %v562 = vrot.slane %v554, 4
    %v564 = vsel %vm164, %v556, %v532
    %v565 = vsel %vm164, %v532, %v493
    %v566 = vsel %vm164, %v559, %v562
    %567 = vrot.lane.b32.xlu0 %v458, 123
    %v568 = vpop.permute.xlu0 %567
    %570 = vrot.lane.b32.xlu0 %v458, 27
    %v571 = vpop.permute.xlu0 %570
    %v573 = vsel %vm304, %v568, %v571
    %v574 = vmul.f32 %v573, %v309
    %v576 = vrot.slane %v531, 4
    %v578 = vsel %vm164, %v523, %v503
    %v579 = vsel %vm164, %v503, %v576
    %582 = vrot.lane.b32.xlu0 %v476, 32
    %v583 = vpop.permute.xlu0 %582
    %584 = vrot.lane.b32.xlu0 %v537, 32
    %v585 = vpop.permute.xlu0 %584
    %586 = vrot.lane.b32.xlu0 %v538, 32
    %v587 = vpop.permute.xlu0 %586
    %588 = vrot.lane.b32.xlu0 %v459, 32
    %v589 = vpop.permute.xlu0 %588
    %590 = vrot.lane.b32.xlu0 %v531, 32
    %v591 = vpop.permute.xlu0 %590
    %600 = vrot.lane.b32.xlu0 %v564, 64
    %v601 = vpop.permute.xlu0 %600
    %602 = vrot.lane.b32.xlu0 %v565, 64
    %v603 = vpop.permute.xlu0 %602
    %604 = vrot.lane.b32.xlu0 %v459, 64
    %v605 = vpop.permute.xlu0 %604
    %606 = vrot.lane.b32.xlu0 %v566, 64
    %v607 = vpop.permute.xlu0 %606
    %608 = vrot.lane.b32.xlu0 %v562, 64
    %v609 = vpop.permute.xlu0 %608
    %618 = vrot.lane.b32.xlu0 %v458, 96
    %v619 = vpop.permute.xlu0 %618
    %620 = vrot.lane.b32.xlu0 %v578, 96
    %v621 = vpop.permute.xlu0 %620
    %622 = vrot.lane.b32.xlu0 %v579, 96
    %v623 = vpop.permute.xlu0 %622
    %624 = vrot.lane.b32.xlu0 %v554, 96
    %v625 = vpop.permute.xlu0 %624
    %626 = vrot.lane.b32.xlu0 %v574, 96
    %v627 = vpop.permute.xlu0 %626
    %v633 = vsel %vm393, %v505, %v583
    %v634 = vsel %vm393, %v506, %v585
    %v635 = vsel %vm393, %v458, %v587
    %v636 = vsel %vm393, %v507, %v589
    %v637 = vsel %vm393, %v503, %v591
    %vm638 = vcmask 523264
    %v639 = vsel %vm638, %v633, %v601
    %v640 = vsel %vm638, %v634, %v603
    %v641 = vsel %vm638, %v635, %v605
    %v642 = vsel %vm638, %v636, %v607
    %v643 = vsel %vm638, %v637, %v609
    %vm644 = vcmask 785408
    %v645 = vsel %vm644, %v639, %v619
    %v646 = vsel %vm644, %v640, %v621
    %v647 = vsel %vm644, %v641, %v623
    %v648 = vsel %vm644, %v642, %v625
    %v649 = vsel %vm644, %v643, %v627
    %651 = vset.pattern.permute.xlu0 0
    %652 = vperm.xlu0 %651, %v48
    %v653 = vpop.permute.xlu0 %652
    %656 = vset.pattern.permute.xlu0 0
    %657 = vperm.xlu0 %656, %v49
    %v658 = vpop.permute.xlu0 %657
    %vm660 = vcmask 293888
    %v662 = vsel %vm660, %v42, 0
    %v665 = vsel %vm660, %v43, 0
    %v668 = vsel %vm164, %v649, 0
    %670 = vmatprep.subr.mxu0 0.0
    %671 = vmatpush1.msra.mxu0 %v645
    %672 = vmatprep.subr.mxu0 0.0
    %673 = vmatpush1.msra.mxu0 %v646
    %674 = vmatprep.subr.mxu0 0.0
    %675 = vmatpush1.msra.mxu0 %v647
    %676 = vmatprep.subr.mxu0 0.0
    %677 = vmatpush1.msra.mxu0 %v648
    %678 = vmatprep.subr.mxu0 0.0
    %679 = vmatpush1.msra.mxu0 %v668
    %680 = vmatprep.subr.mxu0 0.0
    %681 = vmatpush1.msra.mxu0 0.0
    %682 = vmatprep.subr.mxu0 0.0
    %683 = vmatpush1.msra.mxu0 0.0
    %684 = vmatprep.subr.mxu0 0.0
    %685 = vmatpush1.msra.mxu0 0.0
    %686 = vmatprep.subr.mxu0 0.0
    %687 = vmatpush1.msra.mxu0 0.0
    %688 = vmatprep.subr.mxu0 0.0
    %689 = vmatpush1.msra.mxu0 0.0
    %690 = vmatprep.subr.mxu0 0.0
    %691 = vmatpush1.msra.mxu0 0.0
    %692 = vmatprep.subr.mxu0 0.0
    %693 = vmatpush1.msra.mxu0 0.0
    %694 = vmatprep.subr.mxu0 0.0
    %695 = vmatpush1.msra.mxu0 0.0
    %696 = vmatprep.subr.mxu0 0.0
    %697 = vmatpush1.msra.mxu0 0.0
    %698 = vmatprep.subr.mxu0 0.0
    %699 = vmatpush1.msra.mxu0 0.0
    %700 = vmatprep.subr.mxu0 0.0
    %701 = vmatpush1.msra.mxu0 0.0
    %702 = vmatprep.subr.mxu0 0.0
    %703 = vmatpush1.msra.mxu0 0.0
    %704 = vmatprep.subr.mxu0 0.0
    %705 = vmatpush1.msra.mxu0 0.0
    %706 = vmatprep.subr.mxu0 0.0
    %707 = vmatpush1.msra.mxu0 0.0
    %708 = vmatprep.subr.mxu0 0.0
    %709 = vmatpush1.msra.mxu0 0.0
    %710 = vmatprep.subr.mxu0 0.0
    %711 = vmatpush1.msra.mxu0 0.0
    %712 = vmatprep.subr.mxu0 0.0
    %713 = vmatpush1.msra.mxu0 0.0
    %714 = vmatprep.subr.mxu0 0.0
    %715 = vmatpush1.msra.mxu0 0.0
    %716 = vmatprep.subr.mxu0 0.0
    %717 = vmatpush1.msra.mxu0 0.0
    %718 = vmatprep.subr.mxu0 0.0
    %719 = vmatpush1.msra.mxu0 0.0
    %720 = vmatprep.subr.mxu0 0.0
    %721 = vmatpush1.msra.mxu0 0.0
    %722 = vmatprep.subr.mxu0 0.0
    %723 = vmatpush1.msra.mxu0 0.0
    %724 = vmatprep.subr.mxu0 0.0
    %725 = vmatpush1.msra.mxu0 0.0
    %726 = vmatprep.subr.mxu0 0.0
    %727 = vmatpush1.msra.mxu0 0.0
    %728 = vmatprep.subr.mxu0 0.0
    %729 = vmatpush1.msra.mxu0 0.0
    %730 = vmatprep.subr.mxu0 0.0
    %731 = vmatpush1.msra.mxu0 0.0
    %732 = vmatprep.subr.mxu0 0.0
    %733 = vmatpush1.msra.mxu0 0.0
    %734 = vmatprep.mubr.f32.mxu0 0.0
    %735 = vmatmul.mubr.f32.gmra.mrb[0].mxu0 %v662
    %v736 = vpop.f32.mrb[0].mxu0
    %v737 = vadd.f32 %v653, %v736
    %v738 = vpop.f32.mrb[0].mxu0
    %739 = vmatprep.mubr.f32.mxu0 0.0
    %740 = vmatmul.mubr.f32.gmra.mrb[0].mxu0 %v665
    %v741 = vpop.f32.mrb[0].mxu0
    %v742 = vadd.f32 %v658, %v741
    %v743 = vpop.f32.mrb[0].mxu0
    %744 = vdwg.mxu0
    %v745 = vxor.u32 %v737, 2147483648
    %v746 = vxor.u32 %v742, 2147483648
    %v747 = vmul.f32 %v745, 1.442695
    %v748 = vpow.pop %v747
    %v749 = vmul.f32 %v746, 1.442695
    %v750 = vpow.pop %v749
    %v751 = vadd.f32 %v748, 1.0
    %v752 = vadd.f32 %v750, 1.0
    %v753 = vrcp.pop %v751
    %v754 = vmul.f32 1.0, %v753
    %v755 = vrcp.pop %v752
    %v756 = vmul.f32 1.0, %v755
    %757 = vst [vmem:[%s2] sm:$0xff] %v754
    %758 = vst [vmem:[%s2 + $0x8] sm:$0xf] %v756
    // Predicated region
    $region18: #{_decoder_call.1} parent=1 // pred_check
      _
    $region19: #{_decoder_call.1} parent=1 // pred_check_branch
      %760 = sbr.rel (0) target = $region21
    $region20: #{_decoder_call.1} parent=1 // pred_region
      _
    $region21: #{_decoder_call.1} parent=1 // pred_fallthru
      _
    // Predicated region
    $region22: #{_decoder_call.1} parent=1 // pred_check
      _
    $region23: #{_decoder_call.1} parent=1 // pred_check_branch
      %762 = sbr.rel (0) target = $region25
    $region24: #{_decoder_call.1} parent=1 // pred_region
      _
    $region25: #{_decoder_call.1} parent=1 // pred_fallthru
      _
    %763 = vsyncpa [#allocation3], 1
    %764 = vsyncpa [#allocation5], 1

</llo_original>
